<compile_context>
chip_gen: v6e
topology: v6e:2x2x1
jax: 0.10.0
libtpu: 0.0.40
codegen_flags: <defaults>
</compile_context>

<pallas_src>
import functools

import jax
import jax.numpy as jnp
from jax import lax
from jax.experimental import pallas as pl
from jax.experimental.pallas import tpu as pltpu

GAMMA = 2.0
SMOOTH = 1e-5

_LANE = 128
_SUB = 8


def _focal_loss_kernel(logit_ref, target_ref, out_ref, acc_ref, *,
                       num_class, ch, n_chunks, hw, ts, num_j, num_jp,
                       needs_mask):
    p = pl.program_id(1)          # parallel split of the column-tile axis
    j = pl.program_id(2)          # streaming ("arbitrary") column-tile axis

    @pl.when(j == 0)
    def _():
        acc_ref[...] = jnp.zeros_like(acc_ref)

    lo = SMOOTH / (num_class - 1)
    hi = 1.0 - SMOOTH

    def accumulate_chunk(chunk, masked):
        row0 = chunk * ch
        if not isinstance(row0, int):
            row0 = pl.multiple_of(row0, _SUB)
        tgt = target_ref[0, pl.ds(row0, ch), :]                    # (ch,128) i32
        sum_c = jnp.zeros((ch, _LANE), jnp.float32)
        logit_t = jnp.zeros((ch, _LANE), jnp.float32)
        # Per-class compare+select; each class slice is loaded straight from
        # the ref (streaming, no full-tile SSA value).  C is small -> static.
        for c in range(num_class):
            lc = logit_ref[0, c, pl.ds(row0, ch), :].astype(jnp.float32)
            sum_c = sum_c + lc
            logit_t = jnp.where(tgt == c, lc, logit_t)
        # pt = sum_c(clamp(one_hot, lo, hi) * logit) + smooth
        #    = lo * sum_c + (hi - lo) * logit[target] + smooth
        pt = lo * sum_c + (hi - lo) * logit_t + SMOOTH
        logpt = jnp.log(pt)
        one_minus = 1.0 - pt
        loss = -(one_minus * one_minus) * logpt          # gamma == 2, alpha == 1
        if masked:
            # Position-based mask against the true pixel count (covers both the
            # block overhang past S and ragged lanes in the final row).
            base_row = (p * num_jp + j) * ts + row0
            rows = lax.broadcasted_iota(jnp.int32, (ch, _LANE), 0) + base_row
            lanes = lax.broadcasted_iota(jnp.int32, (ch, _LANE), 1)
            pix = rows * _LANE + lanes
            loss = jnp.where(pix < hw, loss, 0.0)
        # Fold the chunk into a single vreg-sized accumulator: pure VPU adds
        # over the chunk axis, no XLU, no big accumulator read-modify-write.
        acc_ref[...] += loss.reshape(ch // _SUB, _SUB, _LANE).sum(axis=0)

    def run(masked):
        if n_chunks == 1:
            accumulate_chunk(0, masked)
        else:
            @pl.loop(0, n_chunks)
            def _(chunk):
                accumulate_chunk(chunk, masked)

    if needs_mask:
        if num_j == 1:
            run(True)
        else:
            is_last = (p * num_jp + j) == (num_j - 1)

            @pl.when(is_last)
            def _():
                run(True)

            @pl.when(jnp.logical_not(is_last))
            def _():
                run(False)
    else:
        run(False)

    @pl.when(j == num_jp - 1)
    def _():
        # Single cross-lane/sublane reduce of one vreg per (n, p) in the epilogue.
        out_ref[...] = jnp.sum(acc_ref[...]).reshape(1, 1, 1)


def focal_loss(logit_nchw, target, *,
               target_tile_bytes=6 * 1024 * 1024,
               chunk_rows=64,
               vmem_limit_bytes=48 * 1024 * 1024):
    """FocalLoss.forward (apply_nonlin=None, alpha=None, gamma=2, smooth=1e-5,
    size_average=True).

    logit_nchw: (N, C, H, W) float32 / bfloat16, positive "probability-like"
                values (apply_nonlin is None in the module).
    target:     (N, 1, H, W) or (N, H, W) integer class ids in [0, C).
    """
    N, C, H, W = logit_nchw.shape
    assert C >= 2, "label smoothing divides by (num_class - 1)"
    HW = H * W

    # Keep narrow dtypes (bf16) flowing straight through; no wrapper-side cast
    # copy for f32/bf16 inputs.  Upcast to f32 happens per-chunk in the kernel.
    if logit_nchw.dtype not in (jnp.float32, jnp.bfloat16):
        logit_nchw = logit_nchw.astype(jnp.float32)
    itemsize = logit_nchw.dtype.itemsize

    # Lane-dense view: (N, C, S, 128).  Pure metadata reshapes; a pad copy only
    # when HW is not a multiple of 128 (and only up to the next 128 pixels).
    S = pl.cdiv(HW, _LANE)
    pad = S * _LANE - HW

    logit3d = logit_nchw.reshape(N, C, HW)
    tgt = target
    if tgt.ndim == 4:
        tgt = jnp.squeeze(tgt, axis=1)
    tgt2d = tgt.reshape(N, HW)
    if tgt2d.dtype != jnp.int32:
        tgt2d = tgt2d.astype(jnp.int32)
    if pad:
        logit3d = jnp.pad(logit3d, ((0, 0), (0, 0), (0, pad)), constant_values=1.0)
        tgt2d = jnp.pad(tgt2d, ((0, 0), (0, pad)))
    logit4d = logit3d.reshape(N, C, S, _LANE)   # free: HW stays lane-dense
    tgt3d = tgt2d.reshape(N, S, _LANE)

    # Tile selection: `ch` rows per register-resident chunk, `ts` rows per
    # DMA'd column tile (ts a multiple of ch).  The ragged tail of S is handled
    # by grid overhang + in-kernel masking, NOT by padding up to ts.
    ch = max(_SUB, (chunk_rows // _SUB) * _SUB)
    ch = min(ch, pl.cdiv(S, _SUB) * _SUB)
    bytes_per_row = C * _LANE * itemsize
    ts = max(ch, (target_tile_bytes // bytes_per_row) // ch * ch)
    ts = min(ts, pl.cdiv(S, ch) * ch)
    n_chunks = ts // ch
    num_j = pl.cdiv(S, ts)
    # Split the column-tile axis into two parallel halves when possible so both
    # v7x TensorCores stay busy even for N == 1 (no-op on single-TC chips).
    P = 2 if (num_j % 2 == 0) else 1
    num_jp = num_j // P
    needs_mask = (HW % (ts * _LANE)) != 0

    kernel = functools.partial(
        _focal_loss_kernel, num_class=C, ch=ch, n_chunks=n_chunks, hw=HW,
        ts=ts, num_j=num_j, num_jp=num_jp, needs_mask=needs_mask)

    partials = pl.pallas_call(
        kernel,
        out_shape=jax.ShapeDtypeStruct((N * P, 1, 1), jnp.float32),
        grid_spec=pltpu.PrefetchScalarGridSpec(
            num_scalar_prefetch=0,
            grid=(N, P, num_jp),
            in_specs=[
                pl.BlockSpec((1, C, ts, _LANE),
                             lambda n, p, j: (n, 0, p * num_jp + j, 0)),
                pl.BlockSpec((1, ts, _LANE),
                             lambda n, p, j: (n, p * num_jp + j, 0)),
            ],
            out_specs=pl.BlockSpec((1, 1, 1),
                                   lambda n, p, j: (n * P + p, 0, 0)),
            scratch_shapes=[pltpu.VMEM((_SUB, _LANE), jnp.float32)],
        ),
        compiler_params=pltpu.CompilerParams(
            dimension_semantics=("parallel", "parallel", "arbitrary"),
            vmem_limit_bytes=vmem_limit_bytes,
        ),
        cost_estimate=pl.CostEstimate(
            flops=(3 * C + 10) * N * HW,
            transcendentals=N * HW,
            bytes_accessed=N * HW * C * itemsize + N * HW * 4 + N * P * 4,
        ),
    )(logit4d, tgt3d)

    # size_average=True: mean over all N*H*W loss elements.
    return jnp.sum(partials) / float(N * HW)


def _focal_loss_ref(logit_nchw, target):
    """Pure-JAX reference mirroring the PyTorch forward (alpha=None, gamma=2)."""
    N, C, H, W = logit_nchw.shape
    logit2d = jnp.transpose(logit_nchw.reshape(N, C, H * W), (0, 2, 1))
    logit2d = logit2d.reshape(-1, C).astype(jnp.float32)
    tgt = jnp.squeeze(target, axis=1).reshape(-1).astype(jnp.int32)
    one_hot = jax.nn.one_hot(tgt, C, dtype=jnp.float32)
    one_hot = jnp.clip(one_hot, SMOOTH / (C - 1), 1.0 - SMOOTH)
    pt = jnp.sum(one_hot * logit2d, axis=1) + SMOOTH
    logpt = jnp.log(pt)
    loss = -(1.0 - pt) ** GAMMA * logpt          # alpha[target] == 1 (alpha=None)
    return jnp.mean(loss)


if __name__ == "__main__":
    key = jax.random.PRNGKey(0)

    configs = [
        # (N, C, H, W, kwargs) — cover default path, parallel column split +
        # multi-chunk + ragged tail + 128-pad, and the unmasked fast path.
        (2, 4, 16, 16, {}),
        (1, 3, 60, 66, dict(target_tile_bytes=24576, chunk_rows=8)),
        (2, 2, 128, 128, {}),
    ]
    for idx, (N, C, H, W, kw) in enumerate(configs):
        key, k1, k2 = jax.random.split(key, 3)
        # apply_nonlin is None in the module; feed positive "probability-like"
        # values so log(pt) is well defined (same behaviour as PyTorch).
        logit = jax.random.uniform(k1, (N, C, H, W), dtype=jnp.float32,
                                   minval=0.05, maxval=1.0)
        target = jax.random.randint(k2, (N, 1, H, W), 0, C, dtype=jnp.int32)

        out = jax.block_until_ready(focal_loss(logit, target, **kw))
        ref = jax.block_until_ready(_focal_loss_ref(logit, target))
        assert jnp.allclose(out, ref, rtol=5e-4, atol=1e-6), (idx, out, ref)

    print("KERNEL_OK")
</pallas_src>

<mosaic_0001>
module attributes {stable_mosaic.version = 11 : i64} {
  func.func @_focal_loss_kernel(%arg0: i32, %arg1: i32, %arg2: i32, %arg3: memref<1x4x8x128xf32, #tpu.memory_space<vmem>>, %arg4: memref<1x8x128xi32, #tpu.memory_space<vmem>>, %arg5: memref<1x1x1xf32, #tpu.memory_space<vmem>>, %arg6: memref<8x128xf32, #tpu.memory_space<vmem>>) attributes {dimension_semantics = [#tpu.dimension_semantics<parallel>, #tpu.dimension_semantics<parallel>, #tpu.dimension_semantics<arbitrary>], iteration_bounds = array<i64: 2, 1, 1>, scalar_prefetch = 0 : i64, scratch_operands = 1 : i64, tpu.core_type = #tpu.core_type<tc>, window_params = [{transform_indices = @transform_0, window_bounds = array<i64: 1, 4, 8, 128>}, {transform_indices = @transform_1, window_bounds = array<i64: 1, 8, 128>}, {transform_indices = @transform_2, window_bounds = array<i64: 1, 1, 1>}]} {
    %c0_i32 = arith.constant 0 : i32
    %0 = arith.cmpi eq, %arg2, %c0_i32 : i32
    %1 = arith.extui %0 : i1 to i32
    %c0_i32_0 = arith.constant 0 : i32
    %2 = arith.cmpi ne, %1, %c0_i32_0 : i32
    scf.if %2 {
      %cst_33 = arith.constant 0.000000e+00 : f32
      %68 = vector.broadcast %cst_33 : f32 to vector<8x128xf32>
      %c0_34 = arith.constant 0 : index
      %c0_35 = arith.constant 0 : index
      %69 = vector.load %arg6[%c0_34, %c0_35] : memref<8x128xf32, #tpu.memory_space<vmem>>, vector<8x128xf32>
      tpu.vector_store %arg6[%c0_34, %c0_35], %68 {strides = array<i32>} : memref<8x128xf32, #tpu.memory_space<vmem>>, vector<8x128xf32>,
    } else {
    }
    %c0 = arith.constant 0 : index
    %c0_1 = arith.constant 0 : index
    %c0_2 = arith.constant 0 : index
    %3 = vector.load %arg4[%c0, %c0_1, %c0_2] : memref<1x8x128xi32, #tpu.memory_space<vmem>>, vector<1x8x128xi32>
    %4 = vector.shape_cast %3 : vector<1x8x128xi32> to vector<8x128xi32>
    %cst = arith.constant 0.000000e+00 : f32
    %5 = vector.broadcast %cst : f32 to vector<8x128xf32>
    %cst_3 = arith.constant 0.000000e+00 : f32
    %6 = vector.broadcast %cst_3 : f32 to vector<8x128xf32>
    %c0_4 = arith.constant 0 : index
    %c0_5 = arith.constant 0 : index
    %c0_6 = arith.constant 0 : index
    %c0_7 = arith.constant 0 : index
    %7 = vector.load %arg3[%c0_4, %c0_5, %c0_6, %c0_7] : memref<1x4x8x128xf32, #tpu.memory_space<vmem>>, vector<1x1x8x128xf32>
    %8 = vector.shape_cast %7 : vector<1x1x8x128xf32> to vector<8x128xf32>
    %9 = arith.addf %5, %8 : vector<8x128xf32>
    %c0_i32_8 = arith.constant 0 : i32
    %10 = vector.broadcast %c0_i32_8 : i32 to vector<8x128xi32>
    %11 = arith.cmpi eq, %4, %10 : vector<8x128xi32>
    %12 = arith.select %11, %8, %6 : vector<8x128xi1>, vector<8x128xf32>
    %c0_9 = arith.constant 0 : index
    %c1 = arith.constant 1 : index
    %c0_10 = arith.constant 0 : index
    %c0_11 = arith.constant 0 : index
    %13 = vector.load %arg3[%c0_9, %c1, %c0_10, %c0_11] : memref<1x4x8x128xf32, #tpu.memory_space<vmem>>, vector<1x1x8x128xf32>
    %14 = vector.shape_cast %13 : vector<1x1x8x128xf32> to vector<8x128xf32>
    %15 = arith.addf %9, %14 : vector<8x128xf32>
    %c1_i32 = arith.constant 1 : i32
    %16 = vector.broadcast %c1_i32 : i32 to vector<8x128xi32>
    %17 = arith.cmpi eq, %4, %16 : vector<8x128xi32>
    %18 = arith.select %17, %14, %12 : vector<8x128xi1>, vector<8x128xf32>
    %c0_12 = arith.constant 0 : index
    %c2 = arith.constant 2 : index
    %c0_13 = arith.constant 0 : index
    %c0_14 = arith.constant 0 : index
    %19 = vector.load %arg3[%c0_12, %c2, %c0_13, %c0_14] : memref<1x4x8x128xf32, #tpu.memory_space<vmem>>, vector<1x1x8x128xf32>
    %20 = vector.shape_cast %19 : vector<1x1x8x128xf32> to vector<8x128xf32>
    %21 = arith.addf %15, %20 : vector<8x128xf32>
    %c2_i32 = arith.constant 2 : i32
    %22 = vector.broadcast %c2_i32 : i32 to vector<8x128xi32>
    %23 = arith.cmpi eq, %4, %22 : vector<8x128xi32>
    %24 = arith.select %23, %20, %18 : vector<8x128xi1>, vector<8x128xf32>
    %c0_15 = arith.constant 0 : index
    %c3 = arith.constant 3 : index
    %c0_16 = arith.constant 0 : index
    %c0_17 = arith.constant 0 : index
    %25 = vector.load %arg3[%c0_15, %c3, %c0_16, %c0_17] : memref<1x4x8x128xf32, #tpu.memory_space<vmem>>, vector<1x1x8x128xf32>
    %26 = vector.shape_cast %25 : vector<1x1x8x128xf32> to vector<8x128xf32>
    %27 = arith.addf %21, %26 : vector<8x128xf32>
    %c3_i32 = arith.constant 3 : i32
    %28 = vector.broadcast %c3_i32 : i32 to vector<8x128xi32>
    %29 = arith.cmpi eq, %4, %28 : vector<8x128xi32>
    %30 = arith.select %29, %26, %24 : vector<8x128xi1>, vector<8x128xf32>
    %cst_18 = arith.constant 3.33333332E-6 : f32
    %31 = vector.broadcast %cst_18 : f32 to vector<8x128xf32>
    %32 = arith.mulf %31, %27 : vector<8x128xf32>
    %cst_19 = arith.constant 0.999986648 : f32
    %33 = vector.broadcast %cst_19 : f32 to vector<8x128xf32>
    %34 = arith.mulf %33, %30 : vector<8x128xf32>
    %35 = arith.addf %32, %34 : vector<8x128xf32>
    %cst_20 = arith.constant 9.99999974E-6 : f32
    %36 = vector.broadcast %cst_20 : f32 to vector<8x128xf32>
    %37 = arith.addf %35, %36 : vector<8x128xf32>
    %38 = math.log %37 : vector<8x128xf32>
    %cst_21 = arith.constant 1.000000e+00 : f32
    %39 = vector.broadcast %cst_21 : f32 to vector<8x128xf32>
    %40 = arith.subf %39, %37 : vector<8x128xf32>
    %41 = arith.mulf %40, %40 : vector<8x128xf32>
    %cst_22 = arith.constant 0.000000e+00 : f32
    %42 = vector.broadcast %cst_22 : f32 to vector<8x128xf32>
    %43 = arith.subf %42, %41 : vector<8x128xf32>
    %44 = arith.mulf %43, %38 : vector<8x128xf32>
    %c1_i32_23 = arith.constant 1 : i32
    %45 = arith.muli %arg1, %c1_i32_23 : i32
    %46 = arith.addi %45, %arg2 : i32
    %c8_i32 = arith.constant 8 : i32
    %47 = arith.muli %46, %c8_i32 : i32
    %c0_i32_24 = arith.constant 0 : i32
    %48 = arith.addi %47, %c0_i32_24 : i32
    %49 = tpu.iota {dimensions = array<i32: 0>} : vector<8x128xi32>
    %50 = vector.broadcast %48 : i32 to vector<8x128xi32>
    %51 = arith.addi %49, %50 : vector<8x128xi32>
    %52 = tpu.iota {dimensions = array<i32: 1>} : vector<8x128xi32>
    %c128_i32 = arith.constant 128 : i32
    %53 = vector.broadcast %c128_i32 : i32 to vector<8x128xi32>
    %54 = arith.muli %51, %53 : vector<8x128xi32>
    %55 = arith.addi %54, %52 : vector<8x128xi32>
    %c256_i32 = arith.constant 256 : i32
    %56 = vector.broadcast %c256_i32 : i32 to vector<8x128xi32>
    %57 = arith.cmpi slt, %55, %56 : vector<8x128xi32>
    %cst_25 = arith.constant 0.000000e+00 : f32
    %58 = vector.broadcast %cst_25 : f32 to vector<8x128xf32>
    %59 = arith.select %57, %44, %58 : vector<8x128xi1>, vector<8x128xf32>
    %c0_26 = arith.constant 0 : index
    %c0_27 = arith.constant 0 : index
    %60 = vector.load %arg6[%c0_26, %c0_27] : memref<8x128xf32, #tpu.memory_space<vmem>>, vector<8x128xf32>
    %61 = vector.shape_cast %59 : vector<8x128xf32> to vector<1x8x128xf32>
    %cst_28 = arith.constant dense<0.000000e+00> : vector<8x128xf32>
    %62 = vector.multi_reduction <add>, %61, %cst_28 [0] : vector<1x8x128xf32> to vector<8x128xf32>
    %63 = arith.addf %60, %62 : vector<8x128xf32>
    %c0_29 = arith.constant 0 : index
    %c0_30 = arith.constant 0 : index
    %64 = vector.load %arg6[%c0_29, %c0_30] : memref<8x128xf32, #tpu.memory_space<vmem>>, vector<8x128xf32>
    tpu.vector_store %arg6[%c0_29, %c0_30], %63 {strides = array<i32>} : memref<8x128xf32, #tpu.memory_space<vmem>>, vector<8x128xf32>,
    %c0_i32_31 = arith.constant 0 : i32
    %65 = arith.cmpi eq, %arg2, %c0_i32_31 : i32
    %66 = arith.extui %65 : i1 to i32
    %c0_i32_32 = arith.constant 0 : i32
    %67 = arith.cmpi ne, %66, %c0_i32_32 : i32
    scf.if %67 {
      %c0_33 = arith.constant 0 : index
      %c0_34 = arith.constant 0 : index
      %68 = vector.load %arg6[%c0_33, %c0_34] : memref<8x128xf32, #tpu.memory_space<vmem>>, vector<8x128xf32>
      %69 = vector.shape_cast %68 : vector<8x128xf32> to vector<1x8x128xf32>
      %cst_35 = arith.constant dense<0.000000e+00> : vector<1xf32>
      %70 = vector.multi_reduction <add>, %69, %cst_35 [1, 2] : vector<1x8x128xf32> to vector<1xf32>
      %71 = vector.shape_cast %70 : vector<1xf32> to vector<1x1x1xf32>
      %72 = vector.extract %71[0, 0, 0] : f32 from vector<1x1x1xf32>
      %73 = vector.broadcast %72 : f32 to vector<1x1x1xf32>
      %c0_36 = arith.constant 0 : index
      %c0_37 = arith.constant 0 : index
      %c0_38 = arith.constant 0 : index
      %74 = vector.load %arg5[%c0_36, %c0_37, %c0_38] : memref<1x1x1xf32, #tpu.memory_space<vmem>>, vector<1x1x1xf32>
      tpu.vector_store %arg5[%c0_36, %c0_37, %c0_38], %73 {strides = array<i32>} : memref<1x1x1xf32, #tpu.memory_space<vmem>>, vector<1x1x1xf32>,
    } else {
    }
    return
  }
  func.func @transform_0(%arg0: i32, %arg1: i32, %arg2: i32) -> (i32, i32, i32, i32) {
    %c1_i32 = arith.constant 1 : i32
    %0 = arith.muli %arg1, %c1_i32 : i32
    %1 = arith.addi %0, %arg2 : i32
    %c0_i32 = arith.constant 0 : i32
    %c0_i32_0 = arith.constant 0 : i32
    %c0_i32_1 = arith.constant 0 : i32
    return %arg0, %c0_i32, %1, %c0_i32_0 : i32, i32, i32, i32
  }
  func.func @transform_1(%arg0: i32, %arg1: i32, %arg2: i32) -> (i32, i32, i32) {
    %c1_i32 = arith.constant 1 : i32
    %0 = arith.muli %arg1, %c1_i32 : i32
    %1 = arith.addi %0, %arg2 : i32
    %c0_i32 = arith.constant 0 : i32
    %c0_i32_0 = arith.constant 0 : i32
    return %arg0, %1, %c0_i32 : i32, i32, i32
  }
  func.func @transform_2(%arg0: i32, %arg1: i32, %arg2: i32) -> (i32, i32, i32) {
    %c1_i32 = arith.constant 1 : i32
    %0 = arith.muli %arg0, %c1_i32 : i32
    %1 = arith.addi %0, %arg1 : i32
    %c0_i32 = arith.constant 0 : i32
    %c0_i32_0 = arith.constant 0 : i32
    %c0_i32_1 = arith.constant 0 : i32
    return %1, %c0_i32, %c0_i32_0 : i32, i32, i32
  }
}

</mosaic_0001>

<llo_original>
// kernel: tpu_custom_call.1
$region0: #{tpu_custom_call.1}
  #allocation0 [shape = 'u32[]', space=smem, size = 0x4, offset = 0x4, fixed_abs, tag = 'smem constant byte address 0x4 - core index']
  #allocation1 [shape = 'u32[144,128]{1,0:T(1,128)}', space=vmem, size = 0x12000, scoped, tag = 'internal scratch']
  #allocation2 [shape = 'f32[8,128]{1,0:T(8,128)}', space=vmem, size = 0x1000, scoped, tag = 'scratch operand']
  #allocation7 [shape = 's32[]', space=sflag, size = 0x4, offset = 0, fixed_abs, tag = 'sflag constant byte address 0x0 - dummy sync flag']
  %s0 = inlined_call_operand.hbm [shape: f32[2,4,2,128], index: 0, kind: input, shape index: {}]
  %s1 = inlined_call_operand.hbm [shape: s32[2,2,128], index: 1, kind: input, shape index: {}]
  %s2 = inlined_call_operand.vmem [shape: f32[2,1,1], index: 2, kind: output, shape index: {}]
  %s3 = sld [smem:[#allocation0]]
  $region57: #{tpu_custom_call.1} parent=0
    _
  %s5 = ssub.s32 1, %s3
  %s6 = scalar_select 0, %s5, %s3
  $region1: #{tpu_custom_call.1} parent=0
    #allocation3 [shape = 'u8[32768]{0}', space=vmem, size = 0x8000, scoped, tag = 'input window, operand 0']
    #allocation4 [shape = 's32[2]{0}', space=sflag, size = 0x8, scoped, tag = 'scoped memory for tpu_custom_call.1']
    #allocation5 [shape = 'u8[8192]{0}', space=vmem, size = 0x2000, scoped, tag = 'input window, operand 1']
    #allocation6 [shape = 's32[2]{0}', space=sflag, size = 0x8, scoped, tag = 'scoped memory for tpu_custom_call.1']
    %7 = vsyncpa [#allocation4], 0
    %s8 = scalar_lea.sflag [#allocation4], 1
    %9 = vsyncpa %s8, 0
    %10 = vsyncpa [#allocation6], 0
    %s11 = scalar_lea.sflag [#allocation6], 1
    %12 = vsyncpa %s11, 0
    loop: start=0, step=1, limit=4
    $region2: #{tpu_custom_call.1} parent=1 // loop_pre_header
      _
    $region3: #{tpu_custom_call.1} parent=1 // loop_header
      %s14 = sphi 0, %s18
      %p15 = scmp.ge.s32.totalorder %s14, 4
      %s21 = sphi 0, %s40
      %s22 = sphi 0, %s36
      %s23 = sphi 0, %s32
      %s24 = sphi 0, %s21
      %s25 = sphi 0, %s22
      %s26 = sphi 0, %s23
      %s27 = sphi 0, %s24
      %s28 = sphi 0, %s25
      %s29 = sphi 0, %s26
      %s47 = sphi 0, %s49
      %s50 = sphi 0, %s47
      %s51 = sphi 0, %s50
      %s67 = sphi 0, %s51
      %s77 = sphi 0, %s79
      %s80 = sphi 0, %s77
      %s81 = sphi 0, %s80
      %s97 = sphi 0, %s81
      %s105 = sphi 0, %s107
      %s108 = sphi 0, %s105
      %s109 = sphi 0, %s108
      %s125 = sphi 0, %s109
    $region4: #{tpu_custom_call.1} parent=1 // loop_header_branch
      %17 = sbr.rel (%p15) target = $region8
    $region5: #{tpu_custom_call.1} parent=1 // loop_body
      %s19 = ssub.s32 %s14, 1
      %s20 = ssub.s32 %s14, 2
      %s30 = sadd.s32 1, %s23
      %p31 = scmp.ge.s32.totalorder %s30, 1
      %s32 = scalar_select %p31, 0, %s30
      %s33 = sadd.s32 1, %s22
      %s34 = scalar_select %p31, %s33, %s22
      %p35 = scmp.ge.s32.totalorder %s34, 1
      %s36 = scalar_select %p35, 0, %s34
      %s37 = sadd.s32 1, %s21
      %s38 = scalar_select %p35, %s37, %s21
      %p39 = scmp.ge.s32.totalorder %s38, 2
      %s40 = scalar_select %p39, 0, %s38
      %s41 = sadd.s32 %s22, %s23
      %s42 = sadd.s32 %s36, %s32
      %s43 = ssub.s32 %s21, %s40
      %s44 = ssub.s32 %s41, %s42
      %s45 = sor.u32 %s43, %s44
      %p46 = scmp.eq.s32.totalorder %s45, 0
      %s48 = sadd.s32 %s47, 1
      %s49 = scalar_select %p46, %s47, %s48
      %p52 = pneg %p46
      %p53 = scmp.eq.s32.totalorder %s14, 1
      %p54 = por %p52, %p53
      %p55 = scmp.ne.s32.totalorder %s47, %s50
      %p56 = scmp.eq.s32.totalorder %s14, 0
      %p57 = por %p55, %p56
      %p58 = scmp.ne.s32.totalorder %s47, %s50
      %p59 = scmp.eq.s32.totalorder %s19, 1
      %p60 = por %p58, %p59
      %p61 = scmp.ne.s32.totalorder %s50, %s51
      %p62 = scmp.eq.s32.totalorder %s19, 0
      %p63 = por %p61, %p62
      %p64 = scmp.ne.s32.totalorder %s50, %s51
      %p65 = scmp.eq.s32.totalorder %s20, 1
      %p66 = por %p64, %p65
      %p68 = scmp.ne.s32.totalorder %s51, %s67
      %p69 = scmp.eq.s32.totalorder %s20, 0
      %p70 = por %p68, %p69
      %s71 = sadd.s32 %s22, %s23
      %s72 = sadd.s32 %s36, %s32
      %s73 = ssub.s32 %s21, %s40
      %s74 = ssub.s32 %s71, %s72
      %s75 = sor.u32 %s73, %s74
      %p76 = scmp.eq.s32.totalorder %s75, 0
      %s78 = sadd.s32 %s77, 1
      %s79 = scalar_select %p76, %s77, %s78
      %p82 = pneg %p76
      %p83 = scmp.eq.s32.totalorder %s14, 1
      %p84 = por %p82, %p83
      %p85 = scmp.ne.s32.totalorder %s77, %s80
      %p86 = scmp.eq.s32.totalorder %s14, 0
      %p87 = por %p85, %p86
      %p88 = scmp.ne.s32.totalorder %s77, %s80
      %p89 = scmp.eq.s32.totalorder %s19, 1
      %p90 = por %p88, %p89
      %p91 = scmp.ne.s32.totalorder %s80, %s81
      %p92 = scmp.eq.s32.totalorder %s19, 0
      %p93 = por %p91, %p92
      %p94 = scmp.ne.s32.totalorder %s80, %s81
      %p95 = scmp.eq.s32.totalorder %s20, 1
      %p96 = por %p94, %p95
      %p98 = scmp.ne.s32.totalorder %s81, %s97
      %p99 = scmp.eq.s32.totalorder %s20, 0
      %p100 = por %p98, %p99
      %s101 = sadd.s32 %s21, %s22
      %s102 = sadd.s32 %s40, %s36
      %s103 = ssub.s32 %s101, %s102
      %p104 = scmp.eq.s32.totalorder %s103, 0
      %s106 = sadd.s32 %s105, 1
      %s107 = scalar_select %p104, %s105, %s106
      %p110 = pneg %p104
      %p111 = scmp.eq.s32.totalorder %s14, 1
      %p112 = por %p110, %p111
      %p113 = scmp.ne.s32.totalorder %s105, %s108
      %p114 = scmp.eq.s32.totalorder %s14, 0
      %p115 = por %p113, %p114
      %p116 = scmp.ne.s32.totalorder %s105, %s108
      %p117 = scmp.eq.s32.totalorder %s19, 1
      %p118 = por %p116, %p117
      %p119 = scmp.ne.s32.totalorder %s108, %s109
      %p120 = scmp.eq.s32.totalorder %s19, 0
      %p121 = por %p119, %p120
      %p122 = scmp.ne.s32.totalorder %s108, %s109
      %p123 = scmp.eq.s32.totalorder %s20, 1
      %p124 = por %p122, %p123
      %p126 = scmp.ne.s32.totalorder %s109, %s125
      %p127 = scmp.eq.s32.totalorder %s20, 0
      %p128 = por %p126, %p127
      %p129 = scmp.le.s32.totalorder 1, %s14
      %p130 = scmp.lt.s32.totalorder %s14, 3
      %p131 = pnand %p129, %p130
      %p132 = pneg %p131
      // Predicated region
      $region9: #{tpu_custom_call.1} parent=5 // pred_check
        _
      $region10: #{tpu_custom_call.1} parent=5 // pred_check_branch
        %134 = sbr.rel (%p131) target = $region12
      $region11: #{tpu_custom_call.1} parent=5 // pred_region
        %s135 = ssub.s32 %s14, 1
      $region12: #{tpu_custom_call.1} parent=5 // pred_fallthru
        _
      %p136 = scmp.lt.s32.totalorder %s14, 2
      // Predicated region
      $region13: #{tpu_custom_call.1} parent=5 // pred_check
        %p137 = pneg %p136
      $region14: #{tpu_custom_call.1} parent=5 // pred_check_branch
        %139 = sbr.rel (%p137) target = $region16
      $region15: #{tpu_custom_call.1} parent=5 // pred_region
        // Predicated region
        $region17: #{tpu_custom_call.1} parent=15 // pred_check
          %p140 = pneg %p57
        $region18: #{tpu_custom_call.1} parent=15 // pred_check_branch
          %142 = sbr.rel (%p140) target = $region20
        $region19: #{tpu_custom_call.1} parent=15 // pred_region
          #allocation8 [shape = 'u32[6]{0}', space=smem, size = 0x18, scoped, tag = 'DMA stride descriptor']
          %s143 = sand.u32 %s47, 1
          %s144 = scalar_lea.sflag [#allocation4], %s143
          %s145 = sand.u32 %s47, 1
          %s146 = smul.addr %s145, 32
          %s147 = scalar_lea.vmem [#allocation3], %s146
          %s148 = sadd.s32 %s22, %s23
          %s149 = smul.u32 4, %s148
          %s150 = ssub.s32 1, %s149
          %s151 = smul.u32 128, %s150
          %s153 = ssub.s32 512, %s151
          %154 = vsyncadd %s144, %s153
          %p155 = scmp.ne.s32.totalorder 0, %s151
          %s156 = smul.addr %s21, 4
          %s157 = sadd.s32 %s149, %s156
          %s158 = smul.addr %s157, 32
          %s159 = scalar_lea.hbm %s0, %s158
          %s160 = smul.u32 2, %s150
          %s161 = smul.u32 %s160, 4
          %s163 = sshll.u32 1, 14
          %s164 = sxor.u32 4294967295, %s163
          %s166 = sld [smem:[#allocation0]]
          %s167 = sadd.s32 2, %s166
          %s169 = sshll.u32 7, 26
          %s170 = sxor.u32 4294967295, %s169
          %s171 = sand.u32 0, %s170
          %s172 = sshll.u32 %s167, 26
          %s173 = sor.u32 %s171, %s172
          %s174 = sshll.u32 %s147, 4
          %s175 = int_to_ptr.vmem [resolvable:$true] %s174
          %s176 = sshll.u32 %s161, 4
          %181 = sst [smem:[#allocation8]] 32
          %s182 = scalar_lea.smem [#allocation8], 1
          %183 = sst [smem:[%s182]] 128
          %s184 = scalar_lea.smem [#allocation8], 2
          %185 = sst [smem:[%s184]] %s150
          %s186 = scalar_lea.smem [#allocation8], 3
          %187 = sst [smem:[%s186]] 32
          %s188 = scalar_lea.smem [#allocation8], 4
          %189 = sst [smem:[%s188]] 32
          %s190 = scalar_lea.smem [#allocation8], 5
          %191 = sst [smem:[%s190]] 2
          %193 = dma.general (%p155), %s159, %s176, %s175, %s144, 131072, [#allocation8], %s173, 0
        $region20: #{tpu_custom_call.1} parent=15 // pred_fallthru
          _
        // Predicated region
        $region21: #{tpu_custom_call.1} parent=15 // pred_check
          %p194 = pneg %p87
        $region22: #{tpu_custom_call.1} parent=15 // pred_check_branch
          %196 = sbr.rel (%p194) target = $region24
        $region23: #{tpu_custom_call.1} parent=15 // pred_region
          %s197 = sand.u32 %s77, 1
          %s198 = scalar_lea.sflag [#allocation6], %s197
          %s199 = sand.u32 %s77, 1
          %s200 = smul.addr %s199, 8
          %s201 = scalar_lea.vmem [#allocation5], %s200
          %s202 = sadd.s32 %s22, %s23
          %s203 = smul.u32 4, %s202
          %s204 = ssub.s32 1, %s203
          %s205 = smul.u32 32, %s204
          %s207 = ssub.s32 128, %s205
          %208 = vsyncadd %s198, %s207
          %p209 = scmp.ne.s32.totalorder 0, %s205
          %s210 = sadd.s32 %s203, %s21
          %s211 = smul.addr %s210, 32
          %s212 = scalar_lea.hbm %s1, %s211
          %s213 = smul.u32 2, %s204
          %s214 = sshll.u32 %s201, 4
          %s215 = int_to_ptr.vmem [resolvable:$true] %s214
          %s216 = sshll.u32 %s213, 4
          %220 = dma.hbm_to_vmem [thread:$0]  (%p209), %s212, %s216, %s215, %s198, 32, 32, 2
        $region24: #{tpu_custom_call.1} parent=15 // pred_fallthru
          _
      $region16: #{tpu_custom_call.1} parent=5 // pred_fallthru
        _
      %p221 = scmp.le.s32.totalorder 1, %s14
      %p222 = scmp.lt.s32.totalorder %s14, 3
      %p223 = pnand %p221, %p222
      %p224 = pneg %p223
      // Predicated region
      $region25: #{tpu_custom_call.1} parent=5 // pred_check
        _
      $region26: #{tpu_custom_call.1} parent=5 // pred_check_branch
        %226 = sbr.rel (%p223) target = $region28
      $region27: #{tpu_custom_call.1} parent=5 // pred_region
        %s227 = ssub.s32 %s14, 1
        %s228 = sand.u32 %s50, 1
        %s229 = scalar_lea.sflag [#allocation4], %s228
        %s230 = sand.u32 %s50, 1
        %s231 = smul.addr %s230, 32
        %s232 = scalar_lea.vmem [#allocation3], %s231
        // Predicated region
        $region29: #{tpu_custom_call.1} parent=27 // pred_check
          %p233 = pneg %p63
        $region30: #{tpu_custom_call.1} parent=27 // pred_check_branch
          %235 = sbr.rel (%p233) target = $region32
        $region31: #{tpu_custom_call.1} parent=27 // pred_region
          %236 = dma.done %s229, 512
        $region32: #{tpu_custom_call.1} parent=27 // pred_fallthru
          _
        %s237 = sand.u32 %s80, 1
        %s238 = scalar_lea.sflag [#allocation6], %s237
        %s239 = sand.u32 %s80, 1
        %s240 = smul.addr %s239, 8
        %s241 = scalar_lea.vmem [#allocation5], %s240
        // Predicated region
        $region33: #{tpu_custom_call.1} parent=27 // pred_check
          %p242 = pneg %p93
        $region34: #{tpu_custom_call.1} parent=27 // pred_check_branch
          %244 = sbr.rel (%p242) target = $region36
        $region35: #{tpu_custom_call.1} parent=27 // pred_region
          %245 = dma.done %s238, 128
        $region36: #{tpu_custom_call.1} parent=27 // pred_fallthru
          _
        %s246 = sand.u32 %s50, 1
        %s247 = scalar_lea.sflag [#allocation4], %s246
        %s248 = sand.u32 %s50, 1
        %s249 = smul.addr %s248, 32
        %s250 = scalar_lea.vmem [#allocation3], %s249
        %p251 = pneg %p63
        %p252 = pneg %p60
        %s253 = sand.u32 %s80, 1
        %s254 = scalar_lea.sflag [#allocation6], %s253
        %s255 = sand.u32 %s80, 1
        %s256 = smul.addr %s255, 8
        %s257 = scalar_lea.vmem [#allocation5], %s256
        %p258 = pneg %p93
        %p259 = pneg %p90
        %p260 = pneg %p121
        %p261 = pneg %p118
        %s262 = sadd.s32 %s24, %s25
        %p263 = scmp.lt.s32.totalorder %s262, 1
        %s264 = scalar_select %p263, %s262, 1
        %s265 = scalar_lea.vmem %s2, %s264
        %s266 = sadd.s32 %s25, %s26
        %s267 = smul.u32 4, %s266
        %s268 = ssub.s32 1, %s267
        %s269 = smul.u32 128, %s268
        %s270 = sadd.s32 %s25, %s26
        %s271 = smul.u32 4, %s270
        %s272 = ssub.s32 1, %s271
        %s273 = smul.u32 32, %s272
        %s274 = sadd.s32 %s24, %s25
        %p275 = scmp.lt.s32.totalorder %s274, 1
        %s276 = scalar_select %p275, %s274, 1
        %s277 = scalar_lea.vmem %s2, %s276
        %s278 = sadd.s32 %s24, %s25
        %p279 = scmp.eq.s32.totalorder %s26, 0
        // Predicated region
        $region37: #{tpu_custom_call.1} parent=27 // pred_check
          %p280 = pneg %p279
        $region38: #{tpu_custom_call.1} parent=27 // pred_check_branch
          %282 = sbr.rel (%p280) target = $region40
        $region39: #{tpu_custom_call.1} parent=27 // pred_region
          %283 = vst [vmem:[#allocation2] sm:$0xff] 0.0
        $region40: #{tpu_custom_call.1} parent=27 // pred_fallthru
          _
        %v284 = vld [vmem:[%s241] sm:$0xff]
        %v285 = vld [vmem:[%s232] sm:$0xff]
        %v286 = vadd.f32 %v285, 0.0
        %vm287 = vcmp.eq.s32.totalorder %v284, 0
        %v288 = vsel %vm287, %v285, 0.0
        %s289 = scalar_lea.vmem %s232, 8 [#allocation3]
        %v290 = vld [vmem:[%s289] sm:$0xff]
        %v291 = vadd.f32 %v286, %v290
        %vm292 = vcmp.eq.s32.totalorder %v284, 1
        %v293 = vsel %vm292, %v290, %v288
        %s294 = scalar_lea.vmem %s232, 16 [#allocation3]
        %v295 = vld [vmem:[%s294] sm:$0xff]
        %v296 = vadd.f32 %v291, %v295
        %vm297 = vcmp.eq.s32.totalorder %v284, 2
        %v298 = vsel %vm297, %v295, %v293
        %s299 = scalar_lea.vmem %s232, 24 [#allocation3]
        %v300 = vld [vmem:[%s299] sm:$0xff]
        %v301 = vadd.f32 %v296, %v300
        %vm302 = vcmp.eq.s32.totalorder %v284, 3
        %v303 = vsel %vm302, %v300, %v298
        %v304 = vmul.f32 %v301, 3.3333333e-06
        %v305 = vmul.f32 %v303, 0.99998665
        %v306 = vadd.f32 %v304, %v305
        %v307 = vadd.f32 %v306, 1e-05
        %v308 = vlog2.pop %v307
        %v309 = vmul.f32 %v308, 0.6931472
        %v310 = vsub.f32 1.0, %v307
        %v311 = vmul.f32 %v310, %v310
        %v312 = vsub.f32 0.0, %v311
        %v313 = vmul.f32 %v312, %v309
        %s314 = sadd.s32 %s25, %s26
        %s315 = smul.u32 %s314, 8
        %v316 = vlaneseq
        %v317 = vshrl.u32 %v316, 7
        %v318 = vstv %s315
        %v319 = vadd.s32 %v317, %v318
        %v320 = vlaneseq
        %v321 = vand.u32 %v320, 127
        %v322 = vmul.u32 %v319, 128
        %v323 = vadd.s32 %v322, %v321
        %vm324 = vcmp.lt.s32.totalorder %v323, 256
        %v325 = vsel %vm324, %v313, 0.0
        %v326 = vld [vmem:[#allocation2] sm:$0xff]
        %v327 = vadd.f32 %v325, 0.0
        %v328 = vadd.f32 %v326, %v327
        %329 = vst [vmem:[#allocation2] sm:$0xff] %v328
        // Predicated region
        $region41: #{tpu_custom_call.1} parent=27 // pred_check
          %p330 = pneg %p279
        $region42: #{tpu_custom_call.1} parent=27 // pred_check_branch
          %332 = sbr.rel (%p330) target = $region44
        $region43: #{tpu_custom_call.1} parent=27 // pred_region
          %v333 = vld [vmem:[#allocation2] sm:$0xff]
          %334 = vadd.xlane.f32.xlu0 %v333
          %v335 = vpop.xlane.xlu0 %334
          %v336 = vrot.slane %v335, 4
          %v337 = vadd.f32 %v335, %v336
          %v338 = vrot.slane %v337, 2
          %v339 = vadd.f32 %v337, %v338
          %v340 = vrot.slane %v339, 1
          %v341 = vadd.f32 %v339, %v340
          %s342 = vtos %v341
          %v343 = vstv %s342
          %vm344 = vcmask 0
          %345 = vst.msk [vmem:[%s277] sm:$0x1] %vm344, %v343
        $region44: #{tpu_custom_call.1} parent=27 // pred_fallthru
          _
        %s346 = sadd.s32 %s24, %s25
        %p347 = scmp.lt.s32.totalorder %s346, 1
        %s348 = scalar_select %p347, %s346, 1
        %s349 = scalar_lea.vmem %s2, %s348
        // Predicated region
        $region45: #{tpu_custom_call.1} parent=27 // pred_check
          %p350 = pneg %p118
        $region46: #{tpu_custom_call.1} parent=27 // pred_check_branch
          %352 = sbr.rel (%p350) target = $region48
        $region47: #{tpu_custom_call.1} parent=27 // pred_region
          %s353 = sadd.s32 %s24, %s25
        $region48: #{tpu_custom_call.1} parent=27 // pred_fallthru
          _
      $region28: #{tpu_custom_call.1} parent=5 // pred_fallthru
        _
      %p354 = scmp.le.s32.totalorder 2, %s14
      // Predicated region
      $region49: #{tpu_custom_call.1} parent=5 // pred_check
        %p355 = pneg %p354
      $region50: #{tpu_custom_call.1} parent=5 // pred_check_branch
        %357 = sbr.rel (%p355) target = $region52
      $region51: #{tpu_custom_call.1} parent=5 // pred_region
        %s358 = ssub.s32 %s14, 2
        // Predicated region
        $region53: #{tpu_custom_call.1} parent=51 // pred_check
          %p359 = pneg %p124
        $region54: #{tpu_custom_call.1} parent=51 // pred_check_branch
          %361 = sbr.rel (%p359) target = $region56
        $region55: #{tpu_custom_call.1} parent=51 // pred_region
          %s362 = sadd.s32 %s27, %s28
          %p363 = scmp.lt.s32.totalorder %s362, 1
          %s364 = scalar_select %p363, %s362, 1
          %s365 = scalar_lea.vmem %s2, %s364
        $region56: #{tpu_custom_call.1} parent=51 // pred_fallthru
          _
      $region52: #{tpu_custom_call.1} parent=5 // pred_fallthru
        _
    $region6: #{tpu_custom_call.1} parent=1 // loop_footer
      %s18 = sadd.s32 1, %s14
    $region7: #{tpu_custom_call.1} parent=1 // loop_footer_branch
      %13 = sbr.rel target = $region3
    $region8: #{tpu_custom_call.1} parent=1 // loop_exit
      _
    %366 = vsyncpa [#allocation4], 1
    %s367 = scalar_lea.sflag [#allocation4], 1
    %368 = vsyncpa %s367, 1
    %369 = vsyncpa [#allocation6], 1
    %s370 = scalar_lea.sflag [#allocation6], 1
    %371 = vsyncpa %s370, 1

</llo_original>
